<compile_context>
chip_gen: v7x
topology: tpu7x:2x2x1
jax: 0.10.0
libtpu: 0.0.40
codegen_flags: <defaults>
</compile_context>

<pallas_src>
import functools

import jax
import jax.numpy as jnp
from jax.experimental import pallas as pl
from jax.experimental.pallas import tpu as pltpu

LANE = 128
SUBLANE = 8


def _tensorcores_per_chip():
    """Best-effort TensorCores-per-chip: 2 on v7x, 1 on v5e/v6e."""
    try:
        kind = jax.devices()[0].device_kind.lower()
    except Exception:
        return 1
    if "v7" in kind or "7x" in kind:
        return 2
    return 1


def _accumulate(acc_ref, x):
    """acc_ref: (8,128) f32 resident output block; x: (tile,128) f32."""
    r = x.shape[0]
    if r % SUBLANE == 0:
        # (tile,128) -> (tile//8, 8, 128): aligned reshape; the sum over the
        # leading axis is pure elementwise vreg adds on the VPU (no XLU work).
        acc_ref[...] += x.reshape(-1, SUBLANE, LANE).sum(axis=0)
    else:
        # Safety net (not reached: the wrapper always hands us rows % 8 == 0).
        acc_ref[0:1, :] += x.sum(axis=0, keepdims=True)


def _masked_loss_kernel(p_ref, t_ref, m_ref, sum_ref, cnt_ref, *,
                        distance_type, rows, tile, tiles_per_split, need_mask):
    s = pl.program_id(0)   # split (one per TensorCore under CORE_PARALLEL)
    t = pl.program_id(1)   # tile within the split (reduction axis)

    @pl.when(t == 0)
    def _():
        sum_ref[...] = jnp.zeros_like(sum_ref)
        cnt_ref[...] = jnp.zeros_like(cnt_ref)

    p = p_ref[...].astype(jnp.float32)
    tg = t_ref[...].astype(jnp.float32)
    m = m_ref[...].astype(jnp.float32)

    d = (p - tg) * m                      # == p*m - t*m, one fewer vmul/element
    if distance_type == 'L2':
        err = d * d
    elif distance_type == 'L1':
        err = jnp.abs(d)
    else:
        raise ValueError(f"unsupported distance_type: {distance_type}")
    cnt = (m > 0).astype(jnp.float32)

    if not need_mask:
        _accumulate(sum_ref, err)
        _accumulate(cnt_ref, cnt)
    else:
        g = s * tiles_per_split + t            # global (unclamped) tile index
        interior = (g + 1) * tile <= rows      # tile fully in-bounds?

        @pl.when(interior)
        def _():                               # interior tiles: no masking cost
            _accumulate(sum_ref, err)
            _accumulate(cnt_ref, cnt)

        @pl.when(jnp.logical_not(interior))
        def _():                               # ragged last tile / clamped dupes
            row_ids = g * tile + jax.lax.broadcasted_iota(
                jnp.int32, (tile, LANE), 0)
            valid = row_ids < rows
            _accumulate(sum_ref, jnp.where(valid, err, 0.0))
            _accumulate(cnt_ref, jnp.where(valid, cnt, 0.0))


def masked_loss(preds, targets, mask, *, distance_type='L2', tile_rows=4096,
                num_splits=None):
    assert preds.shape == targets.shape
    assert preds.shape == mask.shape      # (PyTorch allows broadcast; same-shape here)
    if distance_type not in ('L2', 'L1'):
        raise ValueError(f"unsupported distance_type: {distance_type}")

    total = int(preds.size)
    p_flat = jnp.asarray(preds).reshape(-1)      # free for contiguous arrays
    t_flat = jnp.asarray(targets).reshape(-1)
    m_flat = jnp.asarray(mask).reshape(-1)

    # Kernel handles the largest (rows x 128) prefix with rows % 8 == 0; the
    # < 1024-element remainder is a tiny wrapper-side reduction (no pad copy).
    rows = (total // (LANE * SUBLANE)) * SUBLANE
    head = rows * LANE

    if head < total:
        pt = p_flat[head:].astype(jnp.float32)
        tt = t_flat[head:].astype(jnp.float32)
        mt = m_flat[head:].astype(jnp.float32)
        dt = (pt - tt) * mt
        tail_sum = jnp.sum(dt * dt) if distance_type == 'L2' else jnp.sum(jnp.abs(dt))
        tail_cnt = jnp.sum(mt > 0).astype(jnp.int32)
    else:
        tail_sum = jnp.float32(0.0)
        tail_cnt = jnp.int32(0)

    if rows == 0:   # tiny input: nothing lane-dense to hand the kernel
        return tail_sum / (tail_cnt + 1).astype(jnp.float32)

    p2 = p_flat[:head].reshape(rows, LANE)
    t2 = t_flat[:head].reshape(rows, LANE)
    m2 = m_flat[:head].reshape(rows, LANE)

    cores = _tensorcores_per_chip()
    if num_splits is None:
        num_splits = cores                       # 1 on v5e/v6e, 2 on v7x

    tile = min(tile_rows, rows)
    tile = max(SUBLANE, (tile // SUBLANE) * SUBLANE)   # keep rows % 8 == 0 tiles
    n_tiles = pl.cdiv(rows, tile)
    ns = num_splits if n_tiles >= num_splits else 1
    tps = pl.cdiv(n_tiles, ns)                   # tiles per split
    need_mask = (ns * tps * tile != rows)        # any logically-OOB rows?

    def in_map(s, t):
        # Clamp so a possible extra tile in the last split re-reads the final
        # in-bounds block instead of DMA'ing past the array; its contribution
        # is zeroed by the in-kernel validity mask.
        return (jnp.minimum(s * tps + t, n_tiles - 1), 0)

    def out_map(s, t):
        return (s, 0)   # one resident (8,128) accumulator block per split

    kernel = functools.partial(
        _masked_loss_kernel, distance_type=distance_type, rows=rows,
        tile=tile, tiles_per_split=tps, need_mask=need_mask)

    # Real 2-TC sharding of the split axis only where it exists (v7x); the
    # plain "parallel" string has no measured codegen effect.
    if ns > 1 and ns == cores:
        dim_sem = (pltpu.CORE_PARALLEL, pltpu.ARBITRARY)
    else:
        dim_sem = ("arbitrary", "arbitrary")

    sum_out, cnt_out = pl.pallas_call(
        kernel,
        out_shape=(jax.ShapeDtypeStruct((ns * SUBLANE, LANE), jnp.float32),
                   jax.ShapeDtypeStruct((ns * SUBLANE, LANE), jnp.float32)),
        grid_spec=pltpu.PrefetchScalarGridSpec(
            num_scalar_prefetch=0,
            grid=(ns, tps),
            in_specs=[pl.BlockSpec((tile, LANE), in_map)] * 3,
            out_specs=[pl.BlockSpec((SUBLANE, LANE), out_map)] * 2,
        ),
        compiler_params=pltpu.CompilerParams(
            dimension_semantics=dim_sem,
            vmem_limit_bytes=32 << 20),
    )(p2, t2, m2)

    # Tiny final combine (ns*8*128 floats each); count summed as int32 for
    # exact parity with PyTorch's integer (mask > 0).sum(), plus the "+1".
    count = jnp.sum(cnt_out.astype(jnp.int32)) + tail_cnt + 1
    return (jnp.sum(sum_out) + tail_sum) / count.astype(jnp.float32)


def _reference(preds, targets, mask, distance_type='L2'):
    pm = preds * mask
    tm = targets * mask
    if distance_type == 'L2':
        s = jnp.sum((pm - tm) ** 2)
    else:
        s = jnp.sum(jnp.abs(pm - tm))
    return s / (jnp.sum(mask > 0) + 1)


if __name__ == "__main__":
    key = jax.random.PRNGKey(0)

    # NCHW inputs, consistent with a U-Net style usage.
    cases = [
        ((2, 4, 16, 16), {}),                                # main case, clean path
        ((4, 5, 16, 16), dict(tile_rows=16, num_splits=2)),  # multi-tile + edge-mask/clamp path
        ((3, 3, 11, 13), {}),                                # ragged tail (wrapper-side) path
    ]

    for shape, kw in cases:
        key, kp, kt, km = jax.random.split(key, 4)
        preds = jax.random.normal(kp, shape, dtype=jnp.float32)
        targets = jax.random.normal(kt, shape, dtype=jnp.float32)
        mask = (jax.random.uniform(km, shape) > 0.5).astype(jnp.float32)
        for dist in ('L2', 'L1'):
            out = jax.block_until_ready(
                masked_loss(preds, targets, mask, distance_type=dist, **kw))
            ref = _reference(preds, targets, mask, dist)
            assert jnp.allclose(out, ref, rtol=1e-5, atol=1e-5), (
                shape, dist, float(out), float(ref))

    print("KERNEL_OK")
</pallas_src>

<mosaic_0001>
module attributes {stable_mosaic.version = 11 : i64} {
  func.func @_masked_loss_kernel(%arg0: i32, %arg1: i32, %arg2: memref<16x128xf32, #tpu.memory_space<vmem>>, %arg3: memref<16x128xf32, #tpu.memory_space<vmem>>, %arg4: memref<16x128xf32, #tpu.memory_space<vmem>>, %arg5: memref<8x128xf32, #tpu.memory_space<vmem>>, %arg6: memref<8x128xf32, #tpu.memory_space<vmem>>) attributes {dimension_semantics = [#tpu.dimension_semantics<arbitrary>, #tpu.dimension_semantics<arbitrary>], iteration_bounds = array<i64: 1, 1>, scalar_prefetch = 0 : i64, scratch_operands = 0 : i64, tpu.core_type = #tpu.core_type<tc>, window_params = [{transform_indices = @transform_0, window_bounds = array<i64: 16, 128>}, {transform_indices = @transform_1, window_bounds = array<i64: 16, 128>}, {transform_indices = @transform_2, window_bounds = array<i64: 16, 128>}, {transform_indices = @transform_3, window_bounds = array<i64: 8, 128>}, {transform_indices = @transform_4, window_bounds = array<i64: 8, 128>}]} {
    %c0_i32 = arith.constant 0 : i32
    %0 = arith.cmpi eq, %arg1, %c0_i32 : i32
    %1 = arith.extui %0 : i1 to i32
    %c0_i32_0 = arith.constant 0 : i32
    %2 = arith.cmpi ne, %1, %c0_i32_0 : i32
    scf.if %2 {
      %cst_16 = arith.constant 0.000000e+00 : f32
      %23 = vector.broadcast %cst_16 : f32 to vector<8x128xf32>
      %c0_17 = arith.constant 0 : index
      %c0_18 = arith.constant 0 : index
      %24 = vector.load %arg5[%c0_17, %c0_18] : memref<8x128xf32, #tpu.memory_space<vmem>>, vector<8x128xf32>
      tpu.vector_store %arg5[%c0_17, %c0_18], %23 {strides = array<i32>} : memref<8x128xf32, #tpu.memory_space<vmem>>, vector<8x128xf32>,
      %cst_19 = arith.constant 0.000000e+00 : f32
      %25 = vector.broadcast %cst_19 : f32 to vector<8x128xf32>
      %c0_20 = arith.constant 0 : index
      %c0_21 = arith.constant 0 : index
      %26 = vector.load %arg6[%c0_20, %c0_21] : memref<8x128xf32, #tpu.memory_space<vmem>>, vector<8x128xf32>
      tpu.vector_store %arg6[%c0_20, %c0_21], %25 {strides = array<i32>} : memref<8x128xf32, #tpu.memory_space<vmem>>, vector<8x128xf32>,
    } else {
    }
    %c0 = arith.constant 0 : index
    %c0_1 = arith.constant 0 : index
    %3 = vector.load %arg2[%c0, %c0_1] : memref<16x128xf32, #tpu.memory_space<vmem>>, vector<16x128xf32>
    %c0_2 = arith.constant 0 : index
    %c0_3 = arith.constant 0 : index
    %4 = vector.load %arg3[%c0_2, %c0_3] : memref<16x128xf32, #tpu.memory_space<vmem>>, vector<16x128xf32>
    %c0_4 = arith.constant 0 : index
    %c0_5 = arith.constant 0 : index
    %5 = vector.load %arg4[%c0_4, %c0_5] : memref<16x128xf32, #tpu.memory_space<vmem>>, vector<16x128xf32>
    %6 = arith.subf %3, %4 : vector<16x128xf32>
    %7 = arith.mulf %6, %5 : vector<16x128xf32>
    %8 = arith.mulf %7, %7 : vector<16x128xf32>
    %cst = arith.constant 0.000000e+00 : f32
    %9 = vector.broadcast %cst : f32 to vector<16x128xf32>
    %10 = arith.cmpf ogt, %5, %9 : vector<16x128xf32>
    %11 = arith.extui %10 : vector<16x128xi1> to vector<16x128xi32>
    %12 = arith.sitofp %11 : vector<16x128xi32> to vector<16x128xf32>
    %c0_6 = arith.constant 0 : index
    %c0_7 = arith.constant 0 : index
    %13 = vector.load %arg5[%c0_6, %c0_7] : memref<8x128xf32, #tpu.memory_space<vmem>>, vector<8x128xf32>
    %14 = vector.shape_cast %8 : vector<16x128xf32> to vector<2x8x128xf32>
    %cst_8 = arith.constant dense<0.000000e+00> : vector<8x128xf32>
    %15 = vector.multi_reduction <add>, %14, %cst_8 [0] : vector<2x8x128xf32> to vector<8x128xf32>
    %16 = arith.addf %13, %15 : vector<8x128xf32>
    %c0_9 = arith.constant 0 : index
    %c0_10 = arith.constant 0 : index
    %17 = vector.load %arg5[%c0_9, %c0_10] : memref<8x128xf32, #tpu.memory_space<vmem>>, vector<8x128xf32>
    tpu.vector_store %arg5[%c0_9, %c0_10], %16 {strides = array<i32>} : memref<8x128xf32, #tpu.memory_space<vmem>>, vector<8x128xf32>,
    %c0_11 = arith.constant 0 : index
    %c0_12 = arith.constant 0 : index
    %18 = vector.load %arg6[%c0_11, %c0_12] : memref<8x128xf32, #tpu.memory_space<vmem>>, vector<8x128xf32>
    %19 = vector.shape_cast %12 : vector<16x128xf32> to vector<2x8x128xf32>
    %cst_13 = arith.constant dense<0.000000e+00> : vector<8x128xf32>
    %20 = vector.multi_reduction <add>, %19, %cst_13 [0] : vector<2x8x128xf32> to vector<8x128xf32>
    %21 = arith.addf %18, %20 : vector<8x128xf32>
    %c0_14 = arith.constant 0 : index
    %c0_15 = arith.constant 0 : index
    %22 = vector.load %arg6[%c0_14, %c0_15] : memref<8x128xf32, #tpu.memory_space<vmem>>, vector<8x128xf32>
    tpu.vector_store %arg6[%c0_14, %c0_15], %21 {strides = array<i32>} : memref<8x128xf32, #tpu.memory_space<vmem>>, vector<8x128xf32>,
    return
  }
  func.func @transform_0(%arg0: i32, %arg1: i32) -> (i32, i32) {
    %c1_i32 = arith.constant 1 : i32
    %0 = arith.muli %arg0, %c1_i32 : i32
    %1 = arith.addi %0, %arg1 : i32
    %c0_i32 = arith.constant 0 : i32
    %2 = arith.minsi %1, %c0_i32 : i32
    %c0_i32_0 = arith.constant 0 : i32
    %c0_i32_1 = arith.constant 0 : i32
    return %2, %c0_i32_0 : i32, i32
  }
  func.func @transform_1(%arg0: i32, %arg1: i32) -> (i32, i32) {
    %c1_i32 = arith.constant 1 : i32
    %0 = arith.muli %arg0, %c1_i32 : i32
    %1 = arith.addi %0, %arg1 : i32
    %c0_i32 = arith.constant 0 : i32
    %2 = arith.minsi %1, %c0_i32 : i32
    %c0_i32_0 = arith.constant 0 : i32
    %c0_i32_1 = arith.constant 0 : i32
    return %2, %c0_i32_0 : i32, i32
  }
  func.func @transform_2(%arg0: i32, %arg1: i32) -> (i32, i32) {
    %c1_i32 = arith.constant 1 : i32
    %0 = arith.muli %arg0, %c1_i32 : i32
    %1 = arith.addi %0, %arg1 : i32
    %c0_i32 = arith.constant 0 : i32
    %2 = arith.minsi %1, %c0_i32 : i32
    %c0_i32_0 = arith.constant 0 : i32
    %c0_i32_1 = arith.constant 0 : i32
    return %2, %c0_i32_0 : i32, i32
  }
  func.func @transform_3(%arg0: i32, %arg1: i32) -> (i32, i32) {
    %c0_i32 = arith.constant 0 : i32
    %c0_i32_0 = arith.constant 0 : i32
    return %arg0, %c0_i32 : i32, i32
  }
  func.func @transform_4(%arg0: i32, %arg1: i32) -> (i32, i32) {
    %c0_i32 = arith.constant 0 : i32
    %c0_i32_0 = arith.constant 0 : i32
    return %arg0, %c0_i32 : i32, i32
  }
}

</mosaic_0001>

<llo_original>
// kernel: tpu_custom_call.1
$region0: #{tpu_custom_call.1}
  #allocation0 [shape = 'u32[]', space=smem, size = 0x4, offset = 0x4, fixed_abs, tag = 'smem constant byte address 0x4 - core index']
  #allocation1 [shape = 'u32[144,128]{1,0:T(1,128)}', space=vmem, size = 0x12000, scoped, tag = 'internal scratch']
  %s0 = inlined_call_operand.hbm [shape: f32[16,128], index: 0, kind: input, shape index: {}]
  %s1 = inlined_call_operand.hbm [shape: f32[16,128], index: 1, kind: input, shape index: {}]
  %s2 = inlined_call_operand.hbm [shape: f32[16,128], index: 2, kind: input, shape index: {}]
  %s3 = inlined_call_operand.hbm [shape: f32[8,128], index: 3, kind: output, shape index: {0}]
  %s4 = inlined_call_operand.hbm [shape: f32[8,128], index: 4, kind: output, shape index: {1}]
  %5 = xla_tuple %s3, %s4
  %s6 = sld [smem:[#allocation0]]
  $region46: #{tpu_custom_call.1} parent=0
    _
  %s8 = ssub.s32 1, %s6
  %s9 = scalar_select 0, %s8, %s6
  $region1: #{tpu_custom_call.1} parent=0
    #allocation2 [shape = 'u8[8192]{0}', space=vmem, size = 0x2000, scoped, tag = 'input window, operand 0, single buffered']
    #allocation3 [shape = 's32[1]{0}', space=sflag, size = 0x4, scoped, tag = 'scoped memory for tpu_custom_call.1']
    #allocation4 [shape = 's32[1]{0}', space=sflag, size = 0x4, scoped, tag = 'scoped memory for tpu_custom_call.1']
    #allocation5 [shape = 'u8[8192]{0}', space=vmem, size = 0x2000, scoped, tag = 'input window, operand 1, single buffered']
    #allocation6 [shape = 's32[1]{0}', space=sflag, size = 0x4, scoped, tag = 'scoped memory for tpu_custom_call.1']
    #allocation7 [shape = 'u8[8192]{0}', space=vmem, size = 0x2000, scoped, tag = 'input window, operand 2, single buffered']
    #allocation8 [shape = 'u8[4096]{0}', space=vmem, size = 0x1000, scoped, tag = 'output window, operand 0, single buffered']
    #allocation9 [shape = 'u8[4096]{0}', space=vmem, size = 0x1000, scoped, tag = 'output window, operand 1, single buffered']
    #allocation10 [shape = 's32[1]{0}', space=sflag, size = 0x4, scoped, tag = 'scoped memory for tpu_custom_call.1']
    %10 = vsyncpa [#allocation3], 0
    %11 = vsyncpa [#allocation6], 0
    %12 = vsyncpa [#allocation4], 0
    %13 = vsyncpa [#allocation10], 0
    // Predicated region
    $region2: #{tpu_custom_call.1} parent=1 // pred_check
      _
    $region3: #{tpu_custom_call.1} parent=1 // pred_check_branch
      %15 = sbr.rel (0) target = $region5
    $region4: #{tpu_custom_call.1} parent=1 // pred_region
      %s16 = sadd.s32 0, 0
      %p17 = scmp.lt.s32.totalorder %s16, 0
      %s18 = scalar_select %p17, %s16, 0
      %s19 = smul.u32 2, %s18
      %s21 = ssub.s32 256, 256
      %22 = vsyncadd [#allocation3], %s21
      %s23 = smul.addr %s19, 128
      %s24 = scalar_lea.hbm %s0, %s23
      %s25 = sshll.u32 [#allocation2], 4
      %s26 = int_to_ptr.vmem [resolvable:$true] %s25
      %31 = dma.hbm_to_vmem [thread:$0]  %s24, 256, %s26, [#allocation3], 128, 128, 8
    $region5: #{tpu_custom_call.1} parent=1 // pred_fallthru
      _
    // Predicated region
    $region6: #{tpu_custom_call.1} parent=1 // pred_check
      _
    $region7: #{tpu_custom_call.1} parent=1 // pred_check_branch
      %33 = sbr.rel (0) target = $region9
    $region8: #{tpu_custom_call.1} parent=1 // pred_region
      %s34 = sadd.s32 0, 0
      %p35 = scmp.lt.s32.totalorder %s34, 0
      %s36 = scalar_select %p35, %s34, 0
      %s37 = smul.u32 2, %s36
      %s39 = ssub.s32 256, 256
      %40 = vsyncadd [#allocation6], %s39
      %s41 = smul.addr %s37, 128
      %s42 = scalar_lea.hbm %s1, %s41
      %s43 = sshll.u32 [#allocation5], 4
      %s44 = int_to_ptr.vmem [resolvable:$true] %s43
      %49 = dma.hbm_to_vmem [thread:$0]  %s42, 256, %s44, [#allocation6], 128, 128, 8
    $region9: #{tpu_custom_call.1} parent=1 // pred_fallthru
      _
    // Predicated region
    $region10: #{tpu_custom_call.1} parent=1 // pred_check
      _
    $region11: #{tpu_custom_call.1} parent=1 // pred_check_branch
      %51 = sbr.rel (0) target = $region13
    $region12: #{tpu_custom_call.1} parent=1 // pred_region
      %s52 = sadd.s32 0, 0
      %p53 = scmp.lt.s32.totalorder %s52, 0
      %s54 = scalar_select %p53, %s52, 0
      %s55 = smul.u32 2, %s54
      %s57 = ssub.s32 256, 256
      %58 = vsyncadd [#allocation6], %s57
      %s59 = smul.addr %s55, 128
      %s60 = scalar_lea.hbm %s2, %s59
      %s61 = sshll.u32 [#allocation7], 4
      %s62 = int_to_ptr.vmem [resolvable:$true] %s61
      %67 = dma.hbm_to_vmem [thread:$0]  %s60, 256, %s62, [#allocation6], 128, 128, 8
    $region13: #{tpu_custom_call.1} parent=1 // pred_fallthru
      _
    // Predicated region
    $region14: #{tpu_custom_call.1} parent=1 // pred_check
      _
    $region15: #{tpu_custom_call.1} parent=1 // pred_check_branch
      %69 = sbr.rel (0) target = $region17
    $region16: #{tpu_custom_call.1} parent=1 // pred_region
      %70 = dma.done [#allocation3], 256
    $region17: #{tpu_custom_call.1} parent=1 // pred_fallthru
      _
    // Predicated region
    $region18: #{tpu_custom_call.1} parent=1 // pred_check
      _
    $region19: #{tpu_custom_call.1} parent=1 // pred_check_branch
      %72 = sbr.rel (0) target = $region21
    $region20: #{tpu_custom_call.1} parent=1 // pred_region
      %73 = dma.done [#allocation6], 256
    $region21: #{tpu_custom_call.1} parent=1 // pred_fallthru
      _
    // Predicated region
    $region22: #{tpu_custom_call.1} parent=1 // pred_check
      _
    $region23: #{tpu_custom_call.1} parent=1 // pred_check_branch
      %75 = sbr.rel (0) target = $region25
    $region24: #{tpu_custom_call.1} parent=1 // pred_region
      %76 = dma.done [#allocation6], 256
    $region25: #{tpu_custom_call.1} parent=1 // pred_fallthru
      _
    %s77 = sadd.s32 0, 0
    %p78 = scmp.lt.s32.totalorder %s77, 0
    %s79 = scalar_select %p78, %s77, 0
    %s80 = smul.u32 2, %s79
    %s81 = sadd.s32 0, 0
    %p82 = scmp.lt.s32.totalorder %s81, 0
    %s83 = scalar_select %p82, %s81, 0
    %s84 = smul.u32 2, %s83
    %s85 = sadd.s32 0, 0
    %p86 = scmp.lt.s32.totalorder %s85, 0
    %s87 = scalar_select %p86, %s85, 0
    %s88 = smul.u32 2, %s87
    %p89 = scmp.eq.s32.totalorder 0, 0
    // Predicated region
    $region26: #{tpu_custom_call.1} parent=1 // pred_check
      %p90 = pneg %p89
    $region27: #{tpu_custom_call.1} parent=1 // pred_check_branch
      %92 = sbr.rel (%p90) target = $region29
    $region28: #{tpu_custom_call.1} parent=1 // pred_region
      %93 = vst [vmem:[#allocation8] sm:$0xff] 0.0
      %94 = vst [vmem:[#allocation9] sm:$0xff] 0.0
    $region29: #{tpu_custom_call.1} parent=1 // pred_fallthru
      _
    %v95 = vld [vmem:[#allocation2] sm:$0xff]
    %v96 = vld [vmem:[#allocation2 + $0x8] sm:$0xff]
    %v97 = vld [vmem:[#allocation5] sm:$0xff]
    %v98 = vld [vmem:[#allocation5 + $0x8] sm:$0xff]
    %v99 = vld [vmem:[#allocation7] sm:$0xff]
    %v100 = vld [vmem:[#allocation7 + $0x8] sm:$0xff]
    %v101 = vsub.f32 %v95, %v97
    %v102 = vsub.f32 %v96, %v98
    %v103 = vmul.f32 %v101, %v99
    %v104 = vmul.f32 %v102, %v100
    %v105 = vmul.f32 %v103, %v103
    %v106 = vmul.f32 %v104, %v104
    %vm107 = vcmp.gt.f32.partialorder %v99, 0.0
    %vm108 = vcmp.gt.f32.partialorder %v100, 0.0
    %v109 = vsel %vm107, 1, 0
    %v110 = vsel %vm108, 1, 0
    %v111 = vcvt.s32.f32 %v109
    %v112 = vcvt.s32.f32 %v110
    %v113 = vld [vmem:[#allocation8] sm:$0xff]
    %v114 = vadd.f32 %v105, %v106
    %v115 = vadd.f32 %v113, %v114
    %116 = vst [vmem:[#allocation8] sm:$0xff] %v115
    %v117 = vld [vmem:[#allocation9] sm:$0xff]
    %v118 = vadd.f32 %v111, %v112
    %v119 = vadd.f32 %v117, %v118
    %120 = vst [vmem:[#allocation9] sm:$0xff] %v119
    // Predicated region
    $region30: #{tpu_custom_call.1} parent=1 // pred_check
      _
    $region31: #{tpu_custom_call.1} parent=1 // pred_check_branch
      %122 = sbr.rel (0) target = $region33
    $region32: #{tpu_custom_call.1} parent=1 // pred_region
      %s124 = ssub.s32 128, 128
      %125 = vsyncadd [#allocation4], %s124
      %s127 = sshll.u32 [#allocation8], 4
      %s128 = int_to_ptr.vmem [resolvable:$true] %s127
      %130 = dma.vmem_to_hbm [thread:$0]  %s128, 128, %s3, [#allocation4]
    $region33: #{tpu_custom_call.1} parent=1 // pred_fallthru
      _
    // Predicated region
    $region34: #{tpu_custom_call.1} parent=1 // pred_check
      _
    $region35: #{tpu_custom_call.1} parent=1 // pred_check_branch
      %132 = sbr.rel (0) target = $region37
    $region36: #{tpu_custom_call.1} parent=1 // pred_region
      %s134 = ssub.s32 128, 128
      %135 = vsyncadd [#allocation10], %s134
      %s137 = sshll.u32 [#allocation9], 4
      %s138 = int_to_ptr.vmem [resolvable:$true] %s137
      %140 = dma.vmem_to_hbm [thread:$0]  %s138, 128, %s4, [#allocation10]
    $region37: #{tpu_custom_call.1} parent=1 // pred_fallthru
      _
    // Predicated region
    $region38: #{tpu_custom_call.1} parent=1 // pred_check
      _
    $region39: #{tpu_custom_call.1} parent=1 // pred_check_branch
      %142 = sbr.rel (0) target = $region41
    $region40: #{tpu_custom_call.1} parent=1 // pred_region
      %143 = dma.done [#allocation4], 128
    $region41: #{tpu_custom_call.1} parent=1 // pred_fallthru
      _
    // Predicated region
    $region42: #{tpu_custom_call.1} parent=1 // pred_check
      _
    $region43: #{tpu_custom_call.1} parent=1 // pred_check_branch
      %145 = sbr.rel (0) target = $region45
    $region44: #{tpu_custom_call.1} parent=1 // pred_region
      %146 = dma.done [#allocation10], 128
    $region45: #{tpu_custom_call.1} parent=1 // pred_fallthru
      _
    %147 = vsyncpa [#allocation3], 1
    %148 = vsyncpa [#allocation6], 1
    %149 = vsyncpa [#allocation4], 1
    %150 = vsyncpa [#allocation10], 1

</llo_original>
